<compile_context>
chip_gen: v7x
topology: tpu7x:2x2x1
jax: 0.10.0
libtpu: 0.0.40
codegen_flags: <defaults>
</compile_context>

<pallas_src>
import numpy as np
import jax
import jax.numpy as jnp
from jax.experimental import pallas as pl
from jax.experimental.pallas import tpu as pltpu

verb_classes = ['adjust', 'assemble', 'block', 'blow', 'board', 'break', 'brush_with',
 'buy', 'carry', 'catch', 'chase', 'check', 'clean', 'control', 'cook', 'cut',
 'cut_with', 'direct', 'drag', 'dribble', 'drink_with', 'drive', 'dry', 'eat',
 'eat_at', 'exit', 'feed', 'fill', 'flip', 'flush', 'fly', 'greet', 'grind',
 'groom', 'herd', 'hit', 'hold', 'hop_on', 'hose', 'hug', 'hunt', 'inspect',
 'install', 'jump', 'kick', 'kiss', 'lasso', 'launch', 'lick', 'lie_on',
 'lift', 'light', 'load', 'lose', 'make', 'milk', 'move', 'no_interaction',
 'open', 'operate', 'pack', 'paint', 'park', 'pay', 'peel', 'pet', 'pick',
 'pick_up', 'point', 'pour', 'pull', 'push', 'race', 'read', 'release',
 'repair', 'ride', 'row', 'run', 'sail', 'scratch', 'serve', 'set', 'shear',
 'sign', 'sip', 'sit_at', 'sit_on', 'slide', 'smell', 'spin', 'squeeze',
 'stab', 'stand_on', 'stand_under', 'stick', 'stir', 'stop_at', 'straddle',
 'swing', 'tag', 'talk_on', 'teach', 'text_on', 'throw', 'tie', 'toast',
 'train', 'turn', 'type_on', 'walk', 'wash', 'watch', 'wave', 'wear',
 'wield', 'zip']


def _round_up(x, m):
    return (x + m - 1) // m * m


def _postprocess_kernel(obj_ref,    # (RB, C)  object logits
                        verb_ref,   # (RB, V)  verb logits
                        box_ref,    # (RB, 8)  [cx_s, cy_s, cx_o, cy_o, w_s, h_s, w_o, h_o]
                        scale_ref,  # (RB, 4)  [img_w, img_h, img_w, img_h]
                        out_ref):   # (RB, P)  packed lane-dense output (P multiple of 128)
    C = obj_ref.shape[-1]
    V = verb_ref.shape[-1]
    P = out_ref.shape[-1]

    # ---- object head ----------------------------------------------------
    # argmax over foreground classes on the *logits* (softmax is monotone);
    # score = exp(max_fg - row_max) / sum_exp  -> only (RB,1) ops, no full
    # (RB,C) divide and no (RB,C-1) slice materialisation.
    logits = obj_ref[...]
    lane_c = jax.lax.broadcasted_iota(jnp.int32, logits.shape, 1)
    is_fg = lane_c < (C - 1)                                   # drop "no-object"
    m_all = jnp.max(logits, axis=-1, keepdims=True)
    sumexp = jnp.sum(jnp.exp(logits - m_all), axis=-1, keepdims=True)
    masked = jnp.where(is_fg, logits, -jnp.inf)
    fg_max = jnp.max(masked, axis=-1, keepdims=True)
    obj_label = jnp.min(jnp.where(masked == fg_max, lane_c, C),
                        axis=-1, keepdims=True).astype(jnp.int32)   # first argmax
    obj_score = jnp.exp(fg_max - m_all) * pl.reciprocal(sumexp)

    # ---- verb head -------------------------------------------------------
    vlogits = verb_ref[...]
    vscores = jax.nn.sigmoid(vlogits)
    lane_v = jax.lax.broadcasted_iota(jnp.int32, vlogits.shape, 1)
    v_max = jnp.max(vlogits, axis=-1, keepdims=True)               # sigmoid monotone
    verb_label = jnp.min(jnp.where(vlogits == v_max, lane_v, V),
                         axis=-1, keepdims=True).astype(jnp.int32)

    # ---- boxes: cxcywh -> xyxy for subject+object at once, then scale ----
    box = box_ref[...]                                             # (RB, 8)
    scale = scale_ref[...]                                         # (RB, 4)
    cxy = box[:, 0:4]                                              # [cx_s, cy_s, cx_o, cy_o]
    wh = box[:, 4:8]                                               # [w_s,  h_s,  w_o,  h_o]
    xy_min = (cxy - 0.5 * wh) * scale                              # [x1_s, y1_s, x1_o, y1_o]
    xy_max = (cxy + 0.5 * wh) * scale                              # [x2_s, y2_s, x2_o, y2_o]

    # ---- pack everything into one lane-dense 128-wide slab ---------------
    out_ref[:, 0:V] = vscores
    out_ref[:, V:V + 1] = obj_score
    out_ref[:, V + 1:V + 2] = pltpu.bitcast(obj_label, jnp.float32)
    out_ref[:, V + 2:V + 3] = pltpu.bitcast(verb_label, jnp.float32)
    out_ref[:, V + 3:V + 7] = xy_min
    out_ref[:, V + 7:V + 11] = xy_max
    if V + 11 < P:  # static; only when V != 117 (pad lanes so nothing is uninitialised)
        out_ref[:, V + 11:P] = jnp.zeros((out_ref.shape[0], P - (V + 11)),
                                         jnp.float32)


def post_process_hoi_packed(obj_logits, verb_logits, sub_boxes, obj_boxes,
                            target_sizes):
    """Runs the Pallas kernel; returns (packed (B, Q, P) f32 slab, V)."""
    B, Q, C = obj_logits.shape
    V = verb_logits.shape[-1]
    P = _round_up(V + 11, 128)          # 128 for V=117 (verb|score|2 labels|8 box coords)

    R = B * Q
    if R <= 8:
        Rp, nb = 8, 1                   # single block for tiny workloads
    else:
        Rp, nb = _round_up(R, 16), 2    # 2 row-blocks: both TCs on v7x, <=2 steps elsewhere
    RB = Rp // nb
    pad = Rp - R

    # Flatten batch into rows (sublanes); fuse both box tensors; precompute scale.
    obj2 = obj_logits.reshape(R, C).astype(jnp.float32)
    verb2 = verb_logits.reshape(R, V).astype(jnp.float32)
    sub2 = sub_boxes.reshape(R, 4).astype(jnp.float32)
    ob2 = obj_boxes.reshape(R, 4).astype(jnp.float32)
    boxes8 = jnp.concatenate([sub2[:, 0:2], ob2[:, 0:2],
                              sub2[:, 2:4], ob2[:, 2:4]], axis=-1)      # (R, 8)
    sizes_f = target_sizes.astype(jnp.float32)
    img_h, img_w = sizes_f[:, 0], sizes_f[:, 1]
    scale = jnp.stack([img_w, img_h, img_w, img_h], axis=1)             # (B, 4)
    scale_rows = jnp.broadcast_to(scale[:, None, :], (B, Q, 4)).reshape(R, 4)

    def _pad_rows(x):
        return jnp.pad(x, ((0, pad), (0, 0))) if pad else x

    obj2, verb2, boxes8, scale_rows = map(_pad_rows,
                                          (obj2, verb2, boxes8, scale_rows))

    packed = pl.pallas_call(
        _postprocess_kernel,
        grid=(nb,),
        in_specs=[
            pl.BlockSpec((RB, C), lambda i: (i, 0)),
            pl.BlockSpec((RB, V), lambda i: (i, 0)),
            pl.BlockSpec((RB, 8), lambda i: (i, 0)),
            pl.BlockSpec((RB, 4), lambda i: (i, 0)),
        ],
        out_specs=pl.BlockSpec((RB, P), lambda i: (i, 0)),
        out_shape=jax.ShapeDtypeStruct((Rp, P), jnp.float32),
        compiler_params=pltpu.CompilerParams(
            dimension_semantics=("parallel",)),
    )(obj2, verb2, boxes8, scale_rows)

    return packed[:R].reshape(B, Q, P), V


def post_process_hoi_arrays(obj_logits, verb_logits, sub_boxes, obj_boxes,
                            target_sizes):
    """Unpacks the packed slab into the six logical arrays (thin JAX wrapper)."""
    packed, V = post_process_hoi_packed(obj_logits, verb_logits, sub_boxes,
                                        obj_boxes, target_sizes)
    packed_i = jax.lax.bitcast_convert_type(packed, jnp.int32)
    verb_scores = packed[..., 0:V]
    obj_scores = packed[..., V]
    obj_labels = packed_i[..., V + 1]
    verb_labels = packed_i[..., V + 2]
    x1 = packed[..., V + 3:V + 7]        # [x1_s, y1_s, x1_o, y1_o]
    x2 = packed[..., V + 7:V + 11]       # [x2_s, y2_s, x2_o, y2_o]
    sub = jnp.stack([x1[..., 0], x1[..., 1], x2[..., 0], x2[..., 1]], axis=-1)
    obj = jnp.stack([x1[..., 2], x1[..., 3], x2[..., 2], x2[..., 3]], axis=-1)
    return obj_scores, obj_labels, verb_scores, verb_labels, sub, obj


def post_process_hoi(outputs, target_sizes):
    """Mirrors PostProcessHOI.forward: returns list (per image) of dicts."""
    packed, V = post_process_hoi_packed(outputs['pred_obj_logits'],
                                        outputs['pred_verb_logits'],
                                        outputs['pred_sub_boxes'],
                                        outputs['pred_obj_boxes'],
                                        target_sizes)
    packed = jax.block_until_ready(packed)
    arr = np.ascontiguousarray(np.asarray(packed))      # (B, Q, P) float32
    arr_i = arr.view(np.int32)                           # bit-exact label lanes
    obj_scores = arr[..., V]
    obj_labels = arr_i[..., V + 1]
    verb_labels = arr_i[..., V + 2]
    x1 = arr[..., V + 3:V + 7]
    x2 = arr[..., V + 7:V + 11]
    sub = np.stack([x1[..., 0], x1[..., 1], x2[..., 0], x2[..., 1]], axis=-1)
    obj = np.stack([x1[..., 2], x1[..., 3], x2[..., 2], x2[..., 3]], axis=-1)

    # TODO(synk): host-side list-of-dicts / verb-name lookup has no Pallas
    # equivalent; it is plain python/numpy glue exactly like the torch module.
    results = []
    for os_, ol_, vl_, sb_, ob_ in zip(obj_scores, obj_labels, verb_labels, sub, obj):
        output = []
        for a, b_, c, d, e in zip(os_, ol_, vl_, sb_, ob_):
            output.append({'score': float(a),
                           'label': int(b_),
                           'verb': verb_classes[int(c)],
                           'hbox': d.tolist(),
                           'obox': e.tolist()})
        results.append(output)
    return results


def _reference(obj_logits, verb_logits, sub_boxes, obj_boxes, target_sizes):
    """Pure-JAX reference matching the torch forward semantics."""
    obj_prob = jax.nn.softmax(obj_logits, -1)
    obj_scores = obj_prob[..., :-1].max(-1)
    obj_labels = obj_prob[..., :-1].argmax(-1)
    verb_scores = jax.nn.sigmoid(verb_logits)
    img_h = target_sizes[:, 0].astype(jnp.float32)
    img_w = target_sizes[:, 1].astype(jnp.float32)
    scale = jnp.stack([img_w, img_h, img_w, img_h], axis=1)[:, None, :]

    def cxcywh_to_xyxy(b):
        cx, cy, w, h = b[..., 0], b[..., 1], b[..., 2], b[..., 3]
        return jnp.stack([cx - 0.5 * w, cy - 0.5 * h,
                          cx + 0.5 * w, cy + 0.5 * h], axis=-1)

    sb = cxcywh_to_xyxy(sub_boxes) * scale
    ob = cxcywh_to_xyxy(obj_boxes) * scale
    return obj_scores, obj_labels, verb_scores, sb, ob


if __name__ == "__main__":
    B, Q = 2, 8
    C_OBJ = 12              # 11 object classes + 1 "no-object"
    V = len(verb_classes)   # 117 verb classes -> packed output is exactly 128 lanes

    key = jax.random.PRNGKey(0)
    k1, k2, k3, k4 = jax.random.split(key, 4)
    obj_logits = jax.random.normal(k1, (B, Q, C_OBJ), dtype=jnp.float32)
    verb_logits = jax.random.normal(k2, (B, Q, V), dtype=jnp.float32)
    sub_boxes = jax.random.uniform(k3, (B, Q, 4), dtype=jnp.float32,
                                   minval=0.1, maxval=0.9)
    obj_boxes = jax.random.uniform(k4, (B, Q, 4), dtype=jnp.float32,
                                   minval=0.1, maxval=0.9)
    target_sizes = jnp.array([[480, 640], [320, 512]], dtype=jnp.int32)

    outputs = {'pred_obj_logits': obj_logits,
               'pred_verb_logits': verb_logits,
               'pred_sub_boxes': sub_boxes,
               'pred_obj_boxes': obj_boxes}

    # Kernel results (unpacked)
    obj_s, obj_l, verb_s, verb_l, sb, ob = post_process_hoi_arrays(
        obj_logits, verb_logits, sub_boxes, obj_boxes, target_sizes)
    jax.block_until_ready((obj_s, obj_l, verb_s, verb_l, sb, ob))

    # Correctness check vs. pure-JAX reference
    r_os, r_ol, r_vs, r_sb, r_ob = _reference(obj_logits, verb_logits,
                                              sub_boxes, obj_boxes, target_sizes)
    np.testing.assert_allclose(np.asarray(obj_s), np.asarray(r_os),
                               rtol=1e-4, atol=1e-6)
    np.testing.assert_array_equal(np.asarray(obj_l), np.asarray(r_ol))
    np.testing.assert_allclose(np.asarray(verb_s), np.asarray(r_vs),
                               rtol=1e-5, atol=1e-6)
    np.testing.assert_array_equal(np.asarray(verb_l),
                                  np.asarray(r_vs.argmax(-1)))
    np.testing.assert_allclose(np.asarray(sb), np.asarray(r_sb),
                               rtol=1e-5, atol=1e-4)
    np.testing.assert_allclose(np.asarray(ob), np.asarray(r_ob),
                               rtol=1e-5, atol=1e-4)

    # Full module-equivalent output (host dict building)
    results = post_process_hoi(outputs, target_sizes)
    assert len(results) == B and len(results[0]) == Q
    assert isinstance(results[0][0]['verb'], str)
    assert abs(results[0][0]['score'] - float(np.asarray(r_os)[0, 0])) < 1e-4

    print("KERNEL_OK")
</pallas_src>

<mosaic_0001>
module attributes {stable_mosaic.version = 11 : i64} {
  func.func @_postprocess_kernel(%arg0: i32, %arg1: memref<8x12xf32, #tpu.memory_space<vmem>>, %arg2: memref<8x117xf32, #tpu.memory_space<vmem>>, %arg3: memref<8x8xf32, #tpu.memory_space<vmem>>, %arg4: memref<8x4xf32, #tpu.memory_space<vmem>>, %arg5: memref<8x128xf32, #tpu.memory_space<vmem>>) attributes {dimension_semantics = [#tpu.dimension_semantics<parallel>], iteration_bounds = array<i64: 2>, scalar_prefetch = 0 : i64, scratch_operands = 0 : i64, tpu.core_type = #tpu.core_type<tc>, window_params = [{transform_indices = @transform_0, window_bounds = array<i64: 8, 12>}, {transform_indices = @transform_1, window_bounds = array<i64: 8, 117>}, {transform_indices = @transform_2, window_bounds = array<i64: 8, 8>}, {transform_indices = @transform_3, window_bounds = array<i64: 8, 4>}, {transform_indices = @transform_4, window_bounds = array<i64: 8, 128>}]} {
    %c0 = arith.constant 0 : index
    %c0_0 = arith.constant 0 : index
    %0 = vector.load %arg1[%c0, %c0_0] : memref<8x12xf32, #tpu.memory_space<vmem>>, vector<8x12xf32>
    %1 = tpu.iota {dimensions = array<i32: 1>} : vector<8x12xi32>
    %c11_i32 = arith.constant 11 : i32
    %2 = vector.broadcast %c11_i32 : i32 to vector<8x12xi32>
    %3 = arith.cmpi slt, %1, %2 : vector<8x12xi32>
    %cst = arith.constant dense<0xFF800000> : vector<8xf32>
    %4 = vector.multi_reduction <maximumf>, %0, %cst [1] : vector<8x12xf32> to vector<8xf32>
    %5 = vector.shape_cast %4 : vector<8xf32> to vector<8x1xf32>
    %6 = vector.broadcast %5 : vector<8x1xf32> to vector<8x12xf32>
    %7 = arith.subf %0, %6 : vector<8x12xf32>
    %8 = math.exp %7 : vector<8x12xf32>
    %cst_1 = arith.constant dense<0.000000e+00> : vector<8xf32>
    %9 = vector.multi_reduction <add>, %8, %cst_1 [1] : vector<8x12xf32> to vector<8xf32>
    %10 = vector.shape_cast %9 : vector<8xf32> to vector<8x1xf32>
    %cst_2 = arith.constant 0xFF800000 : f32
    %11 = vector.broadcast %cst_2 : f32 to vector<8x12xf32>
    %12 = arith.select %3, %0, %11 : vector<8x12xi1>, vector<8x12xf32>
    %cst_3 = arith.constant dense<0xFF800000> : vector<8xf32>
    %13 = vector.multi_reduction <maximumf>, %12, %cst_3 [1] : vector<8x12xf32> to vector<8xf32>
    %14 = vector.shape_cast %13 : vector<8xf32> to vector<8x1xf32>
    %15 = vector.broadcast %14 : vector<8x1xf32> to vector<8x12xf32>
    %16 = arith.cmpf oeq, %12, %15 : vector<8x12xf32>
    %c12_i32 = arith.constant 12 : i32
    %17 = vector.broadcast %c12_i32 : i32 to vector<8x12xi32>
    %18 = arith.select %16, %1, %17 : vector<8x12xi1>, vector<8x12xi32>
    %cst_4 = arith.constant dense<2147483647> : vector<8xi32>
    %19 = vector.multi_reduction <minsi>, %18, %cst_4 [1] : vector<8x12xi32> to vector<8xi32>
    %20 = vector.shape_cast %19 : vector<8xi32> to vector<8x1xi32>
    %21 = arith.subf %14, %5 : vector<8x1xf32>
    %22 = math.exp %21 : vector<8x1xf32>
    %23 = tpu.reciprocal %10 : vector<8x1xf32> -> vector<8x1xf32>
    %24 = arith.mulf %22, %23 : vector<8x1xf32>
    %c0_5 = arith.constant 0 : index
    %c0_6 = arith.constant 0 : index
    %25 = vector.load %arg2[%c0_5, %c0_6] : memref<8x117xf32, #tpu.memory_space<vmem>>, vector<8x117xf32>
    %26 = arith.negf %25 : vector<8x117xf32>
    %27 = math.exp %26 : vector<8x117xf32>
    %cst_7 = arith.constant 1.000000e+00 : f32
    %28 = vector.broadcast %cst_7 : f32 to vector<8x117xf32>
    %29 = arith.addf %28, %27 : vector<8x117xf32>
    %30 = arith.divf %28, %29 : vector<8x117xf32>
    %31 = tpu.iota {dimensions = array<i32: 1>} : vector<8x117xi32>
    %cst_8 = arith.constant dense<0xFF800000> : vector<8xf32>
    %32 = vector.multi_reduction <maximumf>, %25, %cst_8 [1] : vector<8x117xf32> to vector<8xf32>
    %33 = vector.shape_cast %32 : vector<8xf32> to vector<8x1xf32>
    %34 = vector.broadcast %33 : vector<8x1xf32> to vector<8x117xf32>
    %35 = arith.cmpf oeq, %25, %34 : vector<8x117xf32>
    %c117_i32 = arith.constant 117 : i32
    %36 = vector.broadcast %c117_i32 : i32 to vector<8x117xi32>
    %37 = arith.select %35, %31, %36 : vector<8x117xi1>, vector<8x117xi32>
    %cst_9 = arith.constant dense<2147483647> : vector<8xi32>
    %38 = vector.multi_reduction <minsi>, %37, %cst_9 [1] : vector<8x117xi32> to vector<8xi32>
    %39 = vector.shape_cast %38 : vector<8xi32> to vector<8x1xi32>
    %c0_10 = arith.constant 0 : index
    %c0_11 = arith.constant 0 : index
    %40 = vector.load %arg3[%c0_10, %c0_11] : memref<8x8xf32, #tpu.memory_space<vmem>>, vector<8x8xf32>
    %c0_12 = arith.constant 0 : index
    %c0_13 = arith.constant 0 : index
    %41 = vector.load %arg4[%c0_12, %c0_13] : memref<8x4xf32, #tpu.memory_space<vmem>>, vector<8x4xf32>
    %42 = vector.extract_strided_slice %40 {offsets = [0, 0], sizes = [8, 4], strides = [1, 1]} : vector<8x8xf32> to vector<8x4xf32>
    %43 = vector.extract_strided_slice %40 {offsets = [0, 4], sizes = [8, 4], strides = [1, 1]} : vector<8x8xf32> to vector<8x4xf32>
    %cst_14 = arith.constant 5.000000e-01 : f32
    %44 = vector.broadcast %cst_14 : f32 to vector<8x4xf32>
    %45 = arith.mulf %44, %43 : vector<8x4xf32>
    %46 = arith.subf %42, %45 : vector<8x4xf32>
    %47 = arith.mulf %46, %41 : vector<8x4xf32>
    %cst_15 = arith.constant 5.000000e-01 : f32
    %48 = vector.broadcast %cst_15 : f32 to vector<8x4xf32>
    %49 = arith.mulf %48, %43 : vector<8x4xf32>
    %50 = arith.addf %42, %49 : vector<8x4xf32>
    %51 = arith.mulf %50, %41 : vector<8x4xf32>
    %c0_16 = arith.constant 0 : index
    %c0_17 = arith.constant 0 : index
    %52 = vector.load %arg5[%c0_16, %c0_17] : memref<8x128xf32, #tpu.memory_space<vmem>>, vector<8x117xf32>
    tpu.vector_store %arg5[%c0_16, %c0_17], %30 {strides = array<i32>} : memref<8x128xf32, #tpu.memory_space<vmem>>, vector<8x117xf32>,
    %c0_18 = arith.constant 0 : index
    %c117 = arith.constant 117 : index
    %53 = vector.load %arg5[%c0_18, %c117] : memref<8x128xf32, #tpu.memory_space<vmem>>, vector<8x1xf32>
    tpu.vector_store %arg5[%c0_18, %c117], %24 {strides = array<i32>} : memref<8x128xf32, #tpu.memory_space<vmem>>, vector<8x1xf32>,
    %54 = tpu.bitcast %20 : vector<8x1xi32> -> vector<8x1xf32>
    %c0_19 = arith.constant 0 : index
    %c118 = arith.constant 118 : index
    %55 = vector.load %arg5[%c0_19, %c118] : memref<8x128xf32, #tpu.memory_space<vmem>>, vector<8x1xf32>
    tpu.vector_store %arg5[%c0_19, %c118], %54 {strides = array<i32>} : memref<8x128xf32, #tpu.memory_space<vmem>>, vector<8x1xf32>,
    %56 = tpu.bitcast %39 : vector<8x1xi32> -> vector<8x1xf32>
    %c0_20 = arith.constant 0 : index
    %c119 = arith.constant 119 : index
    %57 = vector.load %arg5[%c0_20, %c119] : memref<8x128xf32, #tpu.memory_space<vmem>>, vector<8x1xf32>
    tpu.vector_store %arg5[%c0_20, %c119], %56 {strides = array<i32>} : memref<8x128xf32, #tpu.memory_space<vmem>>, vector<8x1xf32>,
    %c0_21 = arith.constant 0 : index
    %c120 = arith.constant 120 : index
    %58 = vector.load %arg5[%c0_21, %c120] : memref<8x128xf32, #tpu.memory_space<vmem>>, vector<8x4xf32>
    tpu.vector_store %arg5[%c0_21, %c120], %47 {strides = array<i32>} : memref<8x128xf32, #tpu.memory_space<vmem>>, vector<8x4xf32>,
    %c0_22 = arith.constant 0 : index
    %c124 = arith.constant 124 : index
    %59 = vector.load %arg5[%c0_22, %c124] : memref<8x128xf32, #tpu.memory_space<vmem>>, vector<8x4xf32>
    tpu.vector_store %arg5[%c0_22, %c124], %51 {strides = array<i32>} : memref<8x128xf32, #tpu.memory_space<vmem>>, vector<8x4xf32>,
    return
  }
  func.func @transform_0(%arg0: i32) -> (i32, i32) {
    %c0_i32 = arith.constant 0 : i32
    %c0_i32_0 = arith.constant 0 : i32
    return %arg0, %c0_i32 : i32, i32
  }
  func.func @transform_1(%arg0: i32) -> (i32, i32) {
    %c0_i32 = arith.constant 0 : i32
    %c0_i32_0 = arith.constant 0 : i32
    return %arg0, %c0_i32 : i32, i32
  }
  func.func @transform_2(%arg0: i32) -> (i32, i32) {
    %c0_i32 = arith.constant 0 : i32
    %c0_i32_0 = arith.constant 0 : i32
    return %arg0, %c0_i32 : i32, i32
  }
  func.func @transform_3(%arg0: i32) -> (i32, i32) {
    %c0_i32 = arith.constant 0 : i32
    %c0_i32_0 = arith.constant 0 : i32
    return %arg0, %c0_i32 : i32, i32
  }
  func.func @transform_4(%arg0: i32) -> (i32, i32) {
    %c0_i32 = arith.constant 0 : i32
    %c0_i32_0 = arith.constant 0 : i32
    return %arg0, %c0_i32 : i32, i32
  }
}

</mosaic_0001>

<llo_original>
// kernel: tpu_custom_call.1
$region0: #{tpu_custom_call.1}
  #allocation0 [shape = 'u32[]', space=smem, size = 0x4, offset = 0x4, fixed_abs, tag = 'smem constant byte address 0x4 - core index']
  #allocation1 [shape = 'u32[144,128]{1,0:T(1,128)}', space=vmem, size = 0x12000, scoped, tag = 'internal scratch']
  %s0 = inlined_call_operand.vmem [shape: f32[16,12], index: 0, kind: input, shape index: {}]
  %s1 = inlined_call_operand.vmem [shape: f32[16,117], index: 1, kind: input, shape index: {}]
  %s2 = inlined_call_operand.vmem [shape: f32[16,8], index: 2, kind: input, shape index: {}]
  %s3 = inlined_call_operand.vmem [shape: f32[16,4], index: 3, kind: input, shape index: {}]
  %s4 = inlined_call_operand.hbm [shape: f32[16,128], index: 4, kind: output, shape index: {}]
  %s5 = sld [smem:[#allocation0]]
  $region49: #{tpu_custom_call.1} parent=0
    _
  %s7 = ssub.s32 1, %s5
  %s8 = scalar_select 0, %s7, %s5
  $region1: #{tpu_custom_call.1} parent=0
    #allocation2 [shape = 'u8[8192]{0}', space=vmem, size = 0x2000, scoped, tag = 'output window, operand 0']
    #allocation3 [shape = 's32[2]{0}', space=sflag, size = 0x8, scoped, tag = 'scoped memory for tpu_custom_call.1']
    %9 = vsyncpa [#allocation3], 0
    %s10 = scalar_lea.sflag [#allocation3], 1
    %11 = vsyncpa %s10, 0
    loop: start=0, step=1, limit=4
    $region2: #{tpu_custom_call.1} parent=1 // loop_pre_header
      _
    $region3: #{tpu_custom_call.1} parent=1 // loop_header
      %s13 = sphi 0, %s17
      %p14 = scmp.ge.s32.totalorder %s13, 4
      %s23 = sphi 0, %s25
      %s26 = sphi 0, %s23
      %s27 = sphi 0, %s26
      %s43 = sphi 0, %s27
      %s49 = sphi 0, %s51
      %s52 = sphi 0, %s49
      %s53 = sphi 0, %s52
      %s69 = sphi 0, %s53
      %s75 = sphi 0, %s77
      %s78 = sphi 0, %s75
      %s79 = sphi 0, %s78
      %s95 = sphi 0, %s79
      %s101 = sphi 0, %s103
      %s104 = sphi 0, %s101
      %s105 = sphi 0, %s104
      %s121 = sphi 0, %s105
      %s127 = sphi 0, %s129
      %s130 = sphi 0, %s127
      %s131 = sphi 0, %s130
      %s147 = sphi 0, %s131
    $region4: #{tpu_custom_call.1} parent=1 // loop_header_branch
      %16 = sbr.rel (%p14) target = $region8
    $region5: #{tpu_custom_call.1} parent=1 // loop_body
      %s18 = ssub.s32 %s13, 1
      %s19 = ssub.s32 %s13, 2
      %s20 = sadd.s32 %s13, 1
      %s21 = ssub.s32 %s13, %s20
      %p22 = scmp.eq.s32.totalorder %s21, 0
      %s24 = sadd.s32 %s23, 1
      %s25 = scalar_select %p22, %s23, %s24
      %p28 = pneg %p22
      %p29 = scmp.eq.s32.totalorder %s13, 1
      %p30 = por %p28, %p29
      %p31 = scmp.ne.s32.totalorder %s23, %s26
      %p32 = scmp.eq.s32.totalorder %s13, 0
      %p33 = por %p31, %p32
      %p34 = scmp.ne.s32.totalorder %s23, %s26
      %p35 = scmp.eq.s32.totalorder %s18, 1
      %p36 = por %p34, %p35
      %p37 = scmp.ne.s32.totalorder %s26, %s27
      %p38 = scmp.eq.s32.totalorder %s18, 0
      %p39 = por %p37, %p38
      %p40 = scmp.ne.s32.totalorder %s26, %s27
      %p41 = scmp.eq.s32.totalorder %s19, 1
      %p42 = por %p40, %p41
      %p44 = scmp.ne.s32.totalorder %s27, %s43
      %p45 = scmp.eq.s32.totalorder %s19, 0
      %p46 = por %p44, %p45
      %s47 = ssub.s32 %s13, %s20
      %p48 = scmp.eq.s32.totalorder %s47, 0
      %s50 = sadd.s32 %s49, 1
      %s51 = scalar_select %p48, %s49, %s50
      %p54 = pneg %p48
      %p55 = scmp.eq.s32.totalorder %s13, 1
      %p56 = por %p54, %p55
      %p57 = scmp.ne.s32.totalorder %s49, %s52
      %p58 = scmp.eq.s32.totalorder %s13, 0
      %p59 = por %p57, %p58
      %p60 = scmp.ne.s32.totalorder %s49, %s52
      %p61 = scmp.eq.s32.totalorder %s18, 1
      %p62 = por %p60, %p61
      %p63 = scmp.ne.s32.totalorder %s52, %s53
      %p64 = scmp.eq.s32.totalorder %s18, 0
      %p65 = por %p63, %p64
      %p66 = scmp.ne.s32.totalorder %s52, %s53
      %p67 = scmp.eq.s32.totalorder %s19, 1
      %p68 = por %p66, %p67
      %p70 = scmp.ne.s32.totalorder %s53, %s69
      %p71 = scmp.eq.s32.totalorder %s19, 0
      %p72 = por %p70, %p71
      %s73 = ssub.s32 %s13, %s20
      %p74 = scmp.eq.s32.totalorder %s73, 0
      %s76 = sadd.s32 %s75, 1
      %s77 = scalar_select %p74, %s75, %s76
      %p80 = pneg %p74
      %p81 = scmp.eq.s32.totalorder %s13, 1
      %p82 = por %p80, %p81
      %p83 = scmp.ne.s32.totalorder %s75, %s78
      %p84 = scmp.eq.s32.totalorder %s13, 0
      %p85 = por %p83, %p84
      %p86 = scmp.ne.s32.totalorder %s75, %s78
      %p87 = scmp.eq.s32.totalorder %s18, 1
      %p88 = por %p86, %p87
      %p89 = scmp.ne.s32.totalorder %s78, %s79
      %p90 = scmp.eq.s32.totalorder %s18, 0
      %p91 = por %p89, %p90
      %p92 = scmp.ne.s32.totalorder %s78, %s79
      %p93 = scmp.eq.s32.totalorder %s19, 1
      %p94 = por %p92, %p93
      %p96 = scmp.ne.s32.totalorder %s79, %s95
      %p97 = scmp.eq.s32.totalorder %s19, 0
      %p98 = por %p96, %p97
      %s99 = ssub.s32 %s13, %s20
      %p100 = scmp.eq.s32.totalorder %s99, 0
      %s102 = sadd.s32 %s101, 1
      %s103 = scalar_select %p100, %s101, %s102
      %p106 = pneg %p100
      %p107 = scmp.eq.s32.totalorder %s13, 1
      %p108 = por %p106, %p107
      %p109 = scmp.ne.s32.totalorder %s101, %s104
      %p110 = scmp.eq.s32.totalorder %s13, 0
      %p111 = por %p109, %p110
      %p112 = scmp.ne.s32.totalorder %s101, %s104
      %p113 = scmp.eq.s32.totalorder %s18, 1
      %p114 = por %p112, %p113
      %p115 = scmp.ne.s32.totalorder %s104, %s105
      %p116 = scmp.eq.s32.totalorder %s18, 0
      %p117 = por %p115, %p116
      %p118 = scmp.ne.s32.totalorder %s104, %s105
      %p119 = scmp.eq.s32.totalorder %s19, 1
      %p120 = por %p118, %p119
      %p122 = scmp.ne.s32.totalorder %s105, %s121
      %p123 = scmp.eq.s32.totalorder %s19, 0
      %p124 = por %p122, %p123
      %s125 = ssub.s32 %s13, %s20
      %p126 = scmp.eq.s32.totalorder %s125, 0
      %s128 = sadd.s32 %s127, 1
      %s129 = scalar_select %p126, %s127, %s128
      %p132 = pneg %p126
      %p133 = scmp.eq.s32.totalorder %s13, 1
      %p134 = por %p132, %p133
      %p135 = scmp.ne.s32.totalorder %s127, %s130
      %p136 = scmp.eq.s32.totalorder %s13, 0
      %p137 = por %p135, %p136
      %p138 = scmp.ne.s32.totalorder %s127, %s130
      %p139 = scmp.eq.s32.totalorder %s18, 1
      %p140 = por %p138, %p139
      %p141 = scmp.ne.s32.totalorder %s130, %s131
      %p142 = scmp.eq.s32.totalorder %s18, 0
      %p143 = por %p141, %p142
      %p144 = scmp.ne.s32.totalorder %s130, %s131
      %p145 = scmp.eq.s32.totalorder %s19, 1
      %p146 = por %p144, %p145
      %p148 = scmp.ne.s32.totalorder %s131, %s147
      %p149 = scmp.eq.s32.totalorder %s19, 0
      %p150 = por %p148, %p149
      %p151 = scmp.le.s32.totalorder 1, %s13
      %p152 = scmp.lt.s32.totalorder %s13, 3
      %p153 = pnand %p151, %p152
      %p154 = pneg %p153
      // Predicated region
      $region9: #{tpu_custom_call.1} parent=5 // pred_check
        _
      $region10: #{tpu_custom_call.1} parent=5 // pred_check_branch
        %156 = sbr.rel (%p153) target = $region12
      $region11: #{tpu_custom_call.1} parent=5 // pred_region
        %s157 = ssub.s32 %s13, 1
      $region12: #{tpu_custom_call.1} parent=5 // pred_fallthru
        _
      %p158 = scmp.lt.s32.totalorder %s13, 2
      // Predicated region
      $region13: #{tpu_custom_call.1} parent=5 // pred_check
        %p159 = pneg %p158
      $region14: #{tpu_custom_call.1} parent=5 // pred_check_branch
        %161 = sbr.rel (%p159) target = $region16
      $region15: #{tpu_custom_call.1} parent=5 // pred_region
        // Predicated region
        $region17: #{tpu_custom_call.1} parent=15 // pred_check
          %p162 = pneg %p33
        $region18: #{tpu_custom_call.1} parent=15 // pred_check_branch
          %164 = sbr.rel (%p162) target = $region20
        $region19: #{tpu_custom_call.1} parent=15 // pred_region
          %p165 = scmp.lt.s32.totalorder %s13, 1
          %s166 = scalar_select %p165, %s13, 1
          %s167 = smul.addr %s166, 8
          %s168 = scalar_lea.vmem %s0, %s167
        $region20: #{tpu_custom_call.1} parent=15 // pred_fallthru
          _
        // Predicated region
        $region21: #{tpu_custom_call.1} parent=15 // pred_check
          %p169 = pneg %p59
        $region22: #{tpu_custom_call.1} parent=15 // pred_check_branch
          %171 = sbr.rel (%p169) target = $region24
        $region23: #{tpu_custom_call.1} parent=15 // pred_region
          %p172 = scmp.lt.s32.totalorder %s13, 1
          %s173 = scalar_select %p172, %s13, 1
          %s174 = smul.addr %s173, 8
          %s175 = scalar_lea.vmem %s1, %s174
        $region24: #{tpu_custom_call.1} parent=15 // pred_fallthru
          _
        // Predicated region
        $region25: #{tpu_custom_call.1} parent=15 // pred_check
          %p176 = pneg %p85
        $region26: #{tpu_custom_call.1} parent=15 // pred_check_branch
          %178 = sbr.rel (%p176) target = $region28
        $region27: #{tpu_custom_call.1} parent=15 // pred_region
          %p179 = scmp.lt.s32.totalorder %s13, 1
          %s180 = scalar_select %p179, %s13, 1
          %s181 = smul.addr %s180, 8
          %s182 = scalar_lea.vmem %s2, %s181
        $region28: #{tpu_custom_call.1} parent=15 // pred_fallthru
          _
        // Predicated region
        $region29: #{tpu_custom_call.1} parent=15 // pred_check
          %p183 = pneg %p111
        $region30: #{tpu_custom_call.1} parent=15 // pred_check_branch
          %185 = sbr.rel (%p183) target = $region32
        $region31: #{tpu_custom_call.1} parent=15 // pred_region
          %p186 = scmp.lt.s32.totalorder %s13, 1
          %s187 = scalar_select %p186, %s13, 1
          %s188 = smul.addr %s187, 8
          %s189 = scalar_lea.vmem %s3, %s188
        $region32: #{tpu_custom_call.1} parent=15 // pred_fallthru
          _
      $region16: #{tpu_custom_call.1} parent=5 // pred_fallthru
        _
      %p190 = scmp.le.s32.totalorder 1, %s13
      %p191 = scmp.lt.s32.totalorder %s13, 3
      %p192 = pnand %p190, %p191
      %p193 = pneg %p192
      // Predicated region
      $region33: #{tpu_custom_call.1} parent=5 // pred_check
        _
      $region34: #{tpu_custom_call.1} parent=5 // pred_check_branch
        %195 = sbr.rel (%p192) target = $region36
      $region35: #{tpu_custom_call.1} parent=5 // pred_region
        %s196 = ssub.s32 %s13, 1
        %p197 = scmp.lt.s32.totalorder %s18, 1
        %s198 = scalar_select %p197, %s18, 1
        %s199 = smul.addr %s198, 8
        %s200 = scalar_lea.vmem %s0, %s199
        %p201 = pneg %p39
        %p202 = pneg %p36
        %p203 = scmp.lt.s32.totalorder %s18, 1
        %s204 = scalar_select %p203, %s18, 1
        %s205 = smul.addr %s204, 8
        %s206 = scalar_lea.vmem %s1, %s205
        %p207 = pneg %p65
        %p208 = pneg %p62
        %p209 = scmp.lt.s32.totalorder %s18, 1
        %s210 = scalar_select %p209, %s18, 1
        %s211 = smul.addr %s210, 8
        %s212 = scalar_lea.vmem %s2, %s211
        %p213 = pneg %p91
        %p214 = pneg %p88
        %p215 = scmp.lt.s32.totalorder %s18, 1
        %s216 = scalar_select %p215, %s18, 1
        %s217 = smul.addr %s216, 8
        %s218 = scalar_lea.vmem %s3, %s217
        %p219 = pneg %p117
        %p220 = pneg %p114
        %p221 = pneg %p143
        %p222 = pneg %p140
        %s223 = sand.u32 %s130, 1
        %s224 = scalar_lea.sflag [#allocation3], %s223
        %s225 = sand.u32 %s130, 1
        %s226 = smul.addr %s225, 8
        %s227 = scalar_lea.vmem [#allocation2], %s226
        %p228 = scmp.lt.s32.totalorder %s18, 1
        %s229 = scalar_select %p228, %s18, 1
        %s230 = smul.addr %s229, 8
        %s231 = scalar_lea.vmem %s0, %s230
        %p232 = scmp.lt.s32.totalorder %s18, 1
        %s233 = scalar_select %p232, %s18, 1
        %s234 = smul.addr %s233, 8
        %s235 = scalar_lea.vmem %s1, %s234
        %p236 = scmp.lt.s32.totalorder %s18, 1
        %s237 = scalar_select %p236, %s18, 1
        %s238 = smul.addr %s237, 8
        %s239 = scalar_lea.vmem %s2, %s238
        %p240 = scmp.lt.s32.totalorder %s18, 1
        %s241 = scalar_select %p240, %s18, 1
        %s242 = smul.addr %s241, 8
        %s243 = scalar_lea.vmem %s3, %s242
        %v244 = vld [vmem:[%s231] sm:$0xff]
        %v245 = vlaneseq
        %v246 = vand.u32 %v245, 127
        %vm247 = vcmp.lt.s32.totalorder %v246, 11
        %vm248 = vcmask 97280
        %v249 = vsel %vm248, %v244, -inf
        %250 = vmax.xlane.f32.xlu0 %v249
        %v251 = vpop.xlane.xlu0 %250
        %v252 = vsub.f32 %v244, %v251
        %v253 = vmul.f32 %v252, 1.442695
        %v254 = vpow.pop %v253
        %v255 = vsel %vm248, %v254, 0.0
        %256 = vadd.xlane.f32.xlu0 %v255
        %v257 = vpop.xlane.xlu0 %256
        %v258 = vsel %vm247, %v244, -inf
        %v259 = vsel %vm248, %v258, -inf
        %260 = vmax.xlane.f32.xlu0 %v259
        %v261 = vpop.xlane.xlu0 %260
        %vm262 = vcmp.eq.f32.partialorder %v258, %v261
        %v263 = vsel %vm262, %v246, 12
        %v264 = vsel %vm248, %v263, 2147483647
        %v265 = vand.u32 %v264, 65535
        %v266 = vshra.s32 %v264, 16
        %v267 = vcvt.s32.f32 %v265
        %v268 = vcvt.s32.f32 %v266
        %269 = vmin.xlane.f32.xlu0 %v268
        %v270 = vpop.xlane.xlu0 %269
        %vm271 = vcmp.eq.f32.partialorder %v268, %v270
        %v272 = vsel %vm271, %v267, inf
        %273 = vmin.xlane.f32.xlu0 %v272
        %v274 = vpop.xlane.xlu0 %273
        %v275 = vcvt.f32.s32 %v274
        %v276 = vcvt.f32.s32 %v270
        %v277 = vshll.u32 %v276, 16
        %v278 = vadd.s32 %v277, %v275
        %v279 = vsub.f32 %v261, %v251
        %v280 = vmul.f32 %v279, 1.442695
        %v281 = vpow.pop %v280
        %v282 = vrcp.pop %v257
        %v283 = vmul.f32 %v281, %v282
        %v284 = vld [vmem:[%s235] sm:$0xff]
        %v285 = vxor.u32 %v284, 2147483648
        %v286 = vmul.f32 %v285, 1.442695
        %v287 = vpow.pop %v286
        %v288 = vadd.f32 %v287, 1.0
        %v289 = vrcp.pop %v288
        %v290 = vmul.f32 1.0, %v289
        %vm291 = vcmask 957440
        %v292 = vsel %vm291, %v284, -inf
        %293 = vmax.xlane.f32.xlu0 %v292
        %v294 = vpop.xlane.xlu0 %293
        %vm295 = vcmp.eq.f32.partialorder %v284, %v294
        %v296 = vsel %vm295, %v246, 117
        %v297 = vsel %vm291, %v296, 2147483647
        %v298 = vand.u32 %v297, 65535
        %v299 = vshra.s32 %v297, 16
        %v300 = vcvt.s32.f32 %v298
        %v301 = vcvt.s32.f32 %v299
        %302 = vmin.xlane.f32.xlu0 %v301
        %v303 = vpop.xlane.xlu0 %302
        %vm304 = vcmp.eq.f32.partialorder %v301, %v303
        %v305 = vsel %vm304, %v300, inf
        %306 = vmin.xlane.f32.xlu0 %v305
        %v307 = vpop.xlane.xlu0 %306
        %v308 = vcvt.f32.s32 %v307
        %v309 = vcvt.f32.s32 %v303
        %v310 = vshll.u32 %v309, 16
        %v311 = vadd.s32 %v310, %v308
        %v312 = vld [vmem:[%s239] sm:$0xff]
        %v313 = vld [vmem:[%s243] sm:$0xff]
        %v314 = vmul.f32 %v312, 0.5
        %316 = vrot.lane.b32.xlu0 %v314, 124
        %v317 = vpop.permute.xlu0 %316
        %v319 = vsub.f32 %v312, %v317
        %v320 = vmul.f32 %v319, %v313
        %v321 = vadd.f32 %v312, %v317
        %v322 = vmul.f32 %v321, %v313
        %323 = vst.msk [vmem:[%s227] sm:$0xff] %vm291, %v290
        %vm324 = vcmask 966568
        %325 = vst.msk [vmem:[%s227] sm:$0xff] %vm324, %v283
        %vm327 = vcmask 974768
        %328 = vst.msk [vmem:[%s227] sm:$0xff] %vm327, %v278
        %vm330 = vcmask 982968
        %331 = vst.msk [vmem:[%s227] sm:$0xff] %vm330, %v311
        %333 = vrot.lane.b32.xlu0 %v320, 120
        %v334 = vpop.permute.xlu0 %333
        %vm336 = vcmask 1015744
        %337 = vst.msk [vmem:[%s227] sm:$0xff] %vm336, %v334
        %339 = vrot.lane.b32.xlu0 %v322, 124
        %v340 = vpop.permute.xlu0 %339
        %vm342 = vcmask 1048544
        %343 = vst.msk [vmem:[%s227] sm:$0xff] %vm342, %v340
        %s344 = sand.u32 %s130, 1
        %s345 = scalar_lea.sflag [#allocation3], %s344
        %s346 = sand.u32 %s130, 1
        %s347 = smul.addr %s346, 8
        %s348 = scalar_lea.vmem [#allocation2], %s347
        // Predicated region
        $region37: #{tpu_custom_call.1} parent=35 // pred_check
          %p349 = pneg %p140
        $region38: #{tpu_custom_call.1} parent=35 // pred_check_branch
          %351 = sbr.rel (%p349) target = $region40
        $region39: #{tpu_custom_call.1} parent=35 // pred_region
          %s353 = ssub.s32 128, 128
          %354 = vsyncadd %s345, %s353
          %s355 = smul.addr %s18, 128
          %s356 = scalar_lea.hbm %s4, %s355
          %s358 = sshll.u32 %s348, 4
          %s359 = int_to_ptr.vmem [resolvable:$true] %s358
          %361 = dma.vmem_to_hbm [thread:$0]  %s359, 128, %s356, %s345
        $region40: #{tpu_custom_call.1} parent=35 // pred_fallthru
          _
      $region36: #{tpu_custom_call.1} parent=5 // pred_fallthru
        _
      %p362 = scmp.le.s32.totalorder 2, %s13
      // Predicated region
      $region41: #{tpu_custom_call.1} parent=5 // pred_check
        %p363 = pneg %p362
      $region42: #{tpu_custom_call.1} parent=5 // pred_check_branch
        %365 = sbr.rel (%p363) target = $region44
      $region43: #{tpu_custom_call.1} parent=5 // pred_region
        %s366 = ssub.s32 %s13, 2
        // Predicated region
        $region45: #{tpu_custom_call.1} parent=43 // pred_check
          %p367 = pneg %p146
        $region46: #{tpu_custom_call.1} parent=43 // pred_check_branch
          %369 = sbr.rel (%p367) target = $region48
        $region47: #{tpu_custom_call.1} parent=43 // pred_region
          %s370 = sand.u32 %s131, 1
          %s371 = scalar_lea.sflag [#allocation3], %s370
          %s372 = sand.u32 %s131, 1
          %s373 = smul.addr %s372, 8
          %s374 = scalar_lea.vmem [#allocation2], %s373
          %375 = dma.done %s371, 128
        $region48: #{tpu_custom_call.1} parent=43 // pred_fallthru
          _
      $region44: #{tpu_custom_call.1} parent=5 // pred_fallthru
        _
    $region6: #{tpu_custom_call.1} parent=1 // loop_footer
      %s17 = sadd.s32 1, %s13
    $region7: #{tpu_custom_call.1} parent=1 // loop_footer_branch
      %12 = sbr.rel target = $region3
    $region8: #{tpu_custom_call.1} parent=1 // loop_exit
      _
    %376 = vsyncpa [#allocation3], 1
    %s377 = scalar_lea.sflag [#allocation3], 1
    %378 = vsyncpa %s377, 1

</llo_original>
